<compile_context>
chip_gen: v7x
topology: tpu7x:2x2x1
jax: 0.10.0
libtpu: 0.0.40
codegen_flags: <defaults>
</compile_context>

<pallas_src>
import jax
import jax.numpy as jnp
import numpy as np
from jax.experimental import pallas as pl
from jax.experimental.pallas import tpu as pltpu

N_STATES = 750
N_ACTIONS = 25
EMBEDDING_DIM = 64
HIDDEN_DIM = 256

# Lane-aligned padded sizes used inside the kernel.
N_STATES_PAD = 768      # next multiple of 128 >= 750
N_ACTIONS_PAD = 128     # next multiple of 128 >= 25
MAX_BATCH_TILE = 512    # VMEM at tm=512 is ~2 MiB, far under scoped limits


def dqn_kernel(state_ref, emb_tbl_ref, w1_ref, b1_ref, w2_ref, b2_ref,
               w3_ref, b3_ref, out_ref):
    """One batch tile: embedding gather (bf16 one-hot MXU matmul) + 3-layer MLP."""
    tm = state_ref.shape[0]
    n_states = emb_tbl_ref.shape[0]

    # Embedding lookup as an exact one-hot matmul on the bf16 MXU path.
    idx = state_ref[...]                                             # (tm, 1) i32
    iota = jax.lax.broadcasted_iota(jnp.int32, (tm, n_states), 1)    # (tm, 768)
    onehot = (iota == idx).astype(jnp.bfloat16)                      # (tm, 768) bf16

    # emb_tbl already holds relu(embedding) (folded in prepare_params), so the
    # gather result is x = relu(embedding(state)) directly. Exact gather.
    x = jnp.dot(onehot, emb_tbl_ref[...],
                preferred_element_type=jnp.float32)                  # (tm, 64) f32

    # bf16 x bf16 matmuls, f32 accumulate, f32 bias add + ReLU.
    h1 = jnp.maximum(
        jnp.dot(x.astype(jnp.bfloat16), w1_ref[...],
                preferred_element_type=jnp.float32) + b1_ref[...], 0.0)
    h2 = jnp.maximum(
        jnp.dot(h1.astype(jnp.bfloat16), w2_ref[...],
                preferred_element_type=jnp.float32) + b2_ref[...], 0.0)
    out_ref[...] = (jnp.dot(h2.astype(jnp.bfloat16), w3_ref[...],
                            preferred_element_type=jnp.float32)
                    + b3_ref[...])


def _round_up(x, m):
    return ((x + m - 1) // m) * m


def _choose_tile(b):
    """Batch tile: single step for small batches, >=2 steps for larger ones."""
    b8 = _round_up(max(b, 1), 8)
    if b8 <= 256:
        return b8                                     # one grid step
    # Larger batches: keep >= 2 parallel grid steps (2-TC sharding on v7x).
    return min(MAX_BATCH_TILE, _round_up((b8 + 1) // 2, 8))


def prepare_params(params):
    """Pad + cast f32 (in, out)-layout params for the kernel.

    Weights -> bf16 (embedding rows padded to 768 with ReLU folded in, fc3
    cols padded to 128), biases stay f32 (b3 padded to 128). Padded entries
    are zero and never affect the sliced (B, 25) result.
    """
    emb_tbl, w1, b1, w2, b2, w3, b3 = params
    emb_p = jnp.zeros((N_STATES_PAD, EMBEDDING_DIM), jnp.float32)
    emb_p = emb_p.at[:N_STATES].set(jnp.maximum(emb_tbl, 0.0))   # fold ReLU
    w3_p = jnp.zeros((HIDDEN_DIM, N_ACTIONS_PAD), jnp.float32)
    w3_p = w3_p.at[:, :N_ACTIONS].set(w3)
    b3_p = jnp.zeros((1, N_ACTIONS_PAD), jnp.float32)
    b3_p = b3_p.at[:, :N_ACTIONS].set(b3)
    return (emb_p.astype(jnp.bfloat16),
            w1.astype(jnp.bfloat16), b1,
            w2.astype(jnp.bfloat16), b2,
            w3_p.astype(jnp.bfloat16), b3_p)


def dqn_forward(state, kernel_params):
    """state: int32 (B,) state indices. Returns Q-values (B, N_ACTIONS) f32."""
    emb_tbl, w1, b1, w2, b2, w3, b3 = kernel_params
    b = state.shape[0]
    tm = _choose_tile(b)
    b_pad = _round_up(max(b, 1), tm)

    # Pad batch with index 0 (valid row); padded rows are sliced off below.
    state_p = jnp.zeros((b_pad, 1), jnp.int32)
    state_p = state_p.at[:b, 0].set(state.astype(jnp.int32))

    grid = (b_pad // tm,)
    flops = 2 * b_pad * (N_STATES_PAD * EMBEDDING_DIM
                         + EMBEDDING_DIM * HIDDEN_DIM
                         + HIDDEN_DIM * HIDDEN_DIM
                         + HIDDEN_DIM * N_ACTIONS_PAD)
    bytes_accessed = (state_p.size * 4
                      + b_pad * N_ACTIONS_PAD * 4
                      + sum(int(np.prod(p.shape)) * p.dtype.itemsize
                            for p in kernel_params))

    out = pl.pallas_call(
        dqn_kernel,
        out_shape=jax.ShapeDtypeStruct((b_pad, N_ACTIONS_PAD), jnp.float32),
        grid=grid,
        in_specs=[
            pl.BlockSpec((tm, 1), lambda i: (i, 0)),                        # state
            pl.BlockSpec((N_STATES_PAD, EMBEDDING_DIM), lambda i: (0, 0)),  # emb (bf16)
            pl.BlockSpec((EMBEDDING_DIM, HIDDEN_DIM), lambda i: (0, 0)),    # w1 (bf16)
            pl.BlockSpec((1, HIDDEN_DIM), lambda i: (0, 0)),                # b1 (f32)
            pl.BlockSpec((HIDDEN_DIM, HIDDEN_DIM), lambda i: (0, 0)),       # w2 (bf16)
            pl.BlockSpec((1, HIDDEN_DIM), lambda i: (0, 0)),                # b2 (f32)
            pl.BlockSpec((HIDDEN_DIM, N_ACTIONS_PAD), lambda i: (0, 0)),    # w3 (bf16)
            pl.BlockSpec((1, N_ACTIONS_PAD), lambda i: (0, 0)),             # b3 (f32)
        ],
        out_specs=pl.BlockSpec((tm, N_ACTIONS_PAD), lambda i: (i, 0)),
        compiler_params=pltpu.CompilerParams(
            dimension_semantics=("parallel",)),
        cost_estimate=pl.CostEstimate(flops=flops, transcendentals=0,
                                      bytes_accessed=bytes_accessed),
    )(state_p, emb_tbl, w1, b1, w2, b2, w3, b3)

    return out[:b, :N_ACTIONS]


def init_params(key):
    """Deterministic init mimicking PyTorch defaults (Embedding ~ N(0,1),
    Linear ~ U(-1/sqrt(fan_in), 1/sqrt(fan_in))). Weights stored as (in, out)."""
    ks = jax.random.split(key, 7)
    emb_tbl = jax.random.normal(ks[0], (N_STATES, EMBEDDING_DIM), jnp.float32)

    def linear(kw, kb, fan_in, fan_out):
        bound = 1.0 / np.sqrt(fan_in)
        w = jax.random.uniform(kw, (fan_in, fan_out), jnp.float32, -bound, bound)
        bias = jax.random.uniform(kb, (1, fan_out), jnp.float32, -bound, bound)
        return w, bias

    w1, b1 = linear(ks[1], ks[2], EMBEDDING_DIM, HIDDEN_DIM)
    w2, b2 = linear(ks[3], ks[4], HIDDEN_DIM, HIDDEN_DIM)
    w3, b3 = linear(ks[5], ks[6], HIDDEN_DIM, N_ACTIONS)
    return (emb_tbl, w1, b1, w2, b2, w3, b3)


def dqn_reference(state, params):
    """Pure-JAX f32 reference for correctness checking."""
    emb_tbl, w1, b1, w2, b2, w3, b3 = params
    x = jnp.maximum(emb_tbl[state], 0.0)
    x = jnp.maximum(x @ w1 + b1, 0.0)
    x = jnp.maximum(x @ w2 + b2, 0.0)
    return x @ w3 + b3


if __name__ == "__main__":
    key = jax.random.PRNGKey(0)
    k_params, k_state = jax.random.split(key)
    params = init_params(k_params)
    kernel_params = prepare_params(params)

    # Small case: batch=8 (single grid step, batch tile 8).
    batch = 8
    state = jax.random.randint(k_state, (batch,), 0, N_STATES, dtype=jnp.int32)
    q_vals = dqn_forward(state, kernel_params)
    jax.block_until_ready(q_vals)
    q_ref = dqn_reference(state, params)
    assert q_vals.shape == (batch, N_ACTIONS)
    assert q_vals.dtype == jnp.float32
    # bf16 weights + bf16 activations (f32 accumulate) vs f32 reference.
    np.testing.assert_allclose(np.asarray(q_vals), np.asarray(q_ref),
                               rtol=3e-2, atol=3e-2)

    # Larger case exercising the >=2-step batch grid (300 -> tile 152, grid=2).
    batch2 = 300
    state2 = jax.random.randint(jax.random.PRNGKey(3), (batch2,), 0, N_STATES,
                                dtype=jnp.int32)
    q2 = dqn_forward(state2, kernel_params)
    jax.block_until_ready(q2)
    np.testing.assert_allclose(np.asarray(q2),
                               np.asarray(dqn_reference(state2, params)),
                               rtol=3e-2, atol=3e-2)

    print("KERNEL_OK")
</pallas_src>

<mosaic_0001>
module attributes {stable_mosaic.version = 11 : i64} {
  func.func @dqn_kernel(%arg0: i32, %arg1: memref<8x1xi32, #tpu.memory_space<vmem>>, %arg2: memref<768x64xbf16, #tpu.memory_space<vmem>>, %arg3: memref<64x256xbf16, #tpu.memory_space<vmem>>, %arg4: memref<1x256xf32, #tpu.memory_space<vmem>>, %arg5: memref<256x256xbf16, #tpu.memory_space<vmem>>, %arg6: memref<1x256xf32, #tpu.memory_space<vmem>>, %arg7: memref<256x128xbf16, #tpu.memory_space<vmem>>, %arg8: memref<1x128xf32, #tpu.memory_space<vmem>>, %arg9: memref<8x128xf32, #tpu.memory_space<vmem>>) attributes {dimension_semantics = [#tpu.dimension_semantics<parallel>], iteration_bounds = array<i64: 1>, scalar_prefetch = 0 : i64, scratch_operands = 0 : i64, tpu.core_type = #tpu.core_type<tc>, window_params = [{transform_indices = @transform_0, window_bounds = array<i64: 8, 1>}, {pipeline_mode = #tpu.pipeline_mode<synchronous>, transform_indices = @transform_1, window_bounds = array<i64: 768, 64>}, {pipeline_mode = #tpu.pipeline_mode<synchronous>, transform_indices = @transform_2, window_bounds = array<i64: 64, 256>}, {pipeline_mode = #tpu.pipeline_mode<synchronous>, transform_indices = @transform_3, window_bounds = array<i64: 1, 256>}, {pipeline_mode = #tpu.pipeline_mode<synchronous>, transform_indices = @transform_4, window_bounds = array<i64: 256, 256>}, {pipeline_mode = #tpu.pipeline_mode<synchronous>, transform_indices = @transform_5, window_bounds = array<i64: 1, 256>}, {pipeline_mode = #tpu.pipeline_mode<synchronous>, transform_indices = @transform_6, window_bounds = array<i64: 256, 128>}, {pipeline_mode = #tpu.pipeline_mode<synchronous>, transform_indices = @transform_7, window_bounds = array<i64: 1, 128>}, {transform_indices = @transform_8, window_bounds = array<i64: 8, 128>}]} {
    %c0 = arith.constant 0 : index
    %c0_0 = arith.constant 0 : index
    %0 = vector.load %arg1[%c0, %c0_0] : memref<8x1xi32, #tpu.memory_space<vmem>>, vector<8x1xi32>
    %1 = tpu.iota {dimensions = array<i32: 1>} : vector<8x768xi32>
    %2 = vector.broadcast %0 : vector<8x1xi32> to vector<8x768xi32>
    %3 = arith.cmpi eq, %1, %2 : vector<8x768xi32>
    %4 = arith.extui %3 : vector<8x768xi1> to vector<8x768xi32>
    %5 = arith.sitofp %4 : vector<8x768xi32> to vector<8x768xf32>
    %6 = arith.truncf %5 : vector<8x768xf32> to vector<8x768xbf16>
    %c0_1 = arith.constant 0 : index
    %c0_2 = arith.constant 0 : index
    %7 = vector.load %arg2[%c0_1, %c0_2] : memref<768x64xbf16, #tpu.memory_space<vmem>>, vector<768x64xbf16>
    %cst = arith.constant dense<0.000000e+00> : vector<8x64xf32>
    %8 = tpu.matmul %6, %7, %cst {dimension_numbers = #tpu.dot_dimension_numbers<[1], [0], [0], [1], [0, 0, 1, 1], [], []>} : vector<8x768xbf16>, vector<768x64xbf16>, vector<8x64xf32> -> vector<8x64xf32>
    %9 = arith.truncf %8 : vector<8x64xf32> to vector<8x64xbf16>
    %c0_3 = arith.constant 0 : index
    %c0_4 = arith.constant 0 : index
    %10 = vector.load %arg3[%c0_3, %c0_4] : memref<64x256xbf16, #tpu.memory_space<vmem>>, vector<64x256xbf16>
    %cst_5 = arith.constant dense<0.000000e+00> : vector<8x256xf32>
    %11 = tpu.matmul %9, %10, %cst_5 {dimension_numbers = #tpu.dot_dimension_numbers<[1], [0], [0], [1], [0, 0, 1, 1], [], []>} : vector<8x64xbf16>, vector<64x256xbf16>, vector<8x256xf32> -> vector<8x256xf32>
    %c0_6 = arith.constant 0 : index
    %c0_7 = arith.constant 0 : index
    %12 = vector.load %arg4[%c0_6, %c0_7] : memref<1x256xf32, #tpu.memory_space<vmem>>, vector<1x256xf32>
    %13 = vector.broadcast %12 : vector<1x256xf32> to vector<8x256xf32>
    %14 = arith.addf %11, %13 : vector<8x256xf32>
    %cst_8 = arith.constant 0.000000e+00 : f32
    %15 = vector.broadcast %cst_8 : f32 to vector<8x256xf32>
    %16 = arith.maximumf %14, %15 : vector<8x256xf32>
    %17 = arith.truncf %16 : vector<8x256xf32> to vector<8x256xbf16>
    %c0_9 = arith.constant 0 : index
    %c0_10 = arith.constant 0 : index
    %18 = vector.load %arg5[%c0_9, %c0_10] : memref<256x256xbf16, #tpu.memory_space<vmem>>, vector<256x256xbf16>
    %cst_11 = arith.constant dense<0.000000e+00> : vector<8x256xf32>
    %19 = tpu.matmul %17, %18, %cst_11 {dimension_numbers = #tpu.dot_dimension_numbers<[1], [0], [0], [1], [0, 0, 1, 1], [], []>} : vector<8x256xbf16>, vector<256x256xbf16>, vector<8x256xf32> -> vector<8x256xf32>
    %c0_12 = arith.constant 0 : index
    %c0_13 = arith.constant 0 : index
    %20 = vector.load %arg6[%c0_12, %c0_13] : memref<1x256xf32, #tpu.memory_space<vmem>>, vector<1x256xf32>
    %21 = vector.broadcast %20 : vector<1x256xf32> to vector<8x256xf32>
    %22 = arith.addf %19, %21 : vector<8x256xf32>
    %cst_14 = arith.constant 0.000000e+00 : f32
    %23 = vector.broadcast %cst_14 : f32 to vector<8x256xf32>
    %24 = arith.maximumf %22, %23 : vector<8x256xf32>
    %25 = arith.truncf %24 : vector<8x256xf32> to vector<8x256xbf16>
    %c0_15 = arith.constant 0 : index
    %c0_16 = arith.constant 0 : index
    %26 = vector.load %arg7[%c0_15, %c0_16] : memref<256x128xbf16, #tpu.memory_space<vmem>>, vector<256x128xbf16>
    %cst_17 = arith.constant dense<0.000000e+00> : vector<8x128xf32>
    %27 = tpu.matmul %25, %26, %cst_17 {dimension_numbers = #tpu.dot_dimension_numbers<[1], [0], [0], [1], [0, 0, 1, 1], [], []>} : vector<8x256xbf16>, vector<256x128xbf16>, vector<8x128xf32> -> vector<8x128xf32>
    %c0_18 = arith.constant 0 : index
    %c0_19 = arith.constant 0 : index
    %28 = vector.load %arg8[%c0_18, %c0_19] : memref<1x128xf32, #tpu.memory_space<vmem>>, vector<1x128xf32>
    %29 = vector.broadcast %28 : vector<1x128xf32> to vector<8x128xf32>
    %30 = arith.addf %27, %29 : vector<8x128xf32>
    %c0_20 = arith.constant 0 : index
    %c0_21 = arith.constant 0 : index
    %31 = vector.load %arg9[%c0_20, %c0_21] : memref<8x128xf32, #tpu.memory_space<vmem>>, vector<8x128xf32>
    tpu.vector_store %arg9[%c0_20, %c0_21], %30 {strides = array<i32>} : memref<8x128xf32, #tpu.memory_space<vmem>>, vector<8x128xf32>,
    return
  }
  func.func @transform_0(%arg0: i32) -> (i32, i32) {
    %c0_i32 = arith.constant 0 : i32
    %c0_i32_0 = arith.constant 0 : i32
    return %arg0, %c0_i32 : i32, i32
  }
  func.func @transform_1(%arg0: i32) -> (i32, i32) {
    %c0_i32 = arith.constant 0 : i32
    %c0_i32_0 = arith.constant 0 : i32
    %c0_i32_1 = arith.constant 0 : i32
    return %c0_i32, %c0_i32_0 : i32, i32
  }
  func.func @transform_2(%arg0: i32) -> (i32, i32) {
    %c0_i32 = arith.constant 0 : i32
    %c0_i32_0 = arith.constant 0 : i32
    %c0_i32_1 = arith.constant 0 : i32
    return %c0_i32, %c0_i32_0 : i32, i32
  }
  func.func @transform_3(%arg0: i32) -> (i32, i32) {
    %c0_i32 = arith.constant 0 : i32
    %c0_i32_0 = arith.constant 0 : i32
    %c0_i32_1 = arith.constant 0 : i32
    return %c0_i32, %c0_i32_0 : i32, i32
  }
  func.func @transform_4(%arg0: i32) -> (i32, i32) {
    %c0_i32 = arith.constant 0 : i32
    %c0_i32_0 = arith.constant 0 : i32
    %c0_i32_1 = arith.constant 0 : i32
    return %c0_i32, %c0_i32_0 : i32, i32
  }
  func.func @transform_5(%arg0: i32) -> (i32, i32) {
    %c0_i32 = arith.constant 0 : i32
    %c0_i32_0 = arith.constant 0 : i32
    %c0_i32_1 = arith.constant 0 : i32
    return %c0_i32, %c0_i32_0 : i32, i32
  }
  func.func @transform_6(%arg0: i32) -> (i32, i32) {
    %c0_i32 = arith.constant 0 : i32
    %c0_i32_0 = arith.constant 0 : i32
    %c0_i32_1 = arith.constant 0 : i32
    return %c0_i32, %c0_i32_0 : i32, i32
  }
  func.func @transform_7(%arg0: i32) -> (i32, i32) {
    %c0_i32 = arith.constant 0 : i32
    %c0_i32_0 = arith.constant 0 : i32
    %c0_i32_1 = arith.constant 0 : i32
    return %c0_i32, %c0_i32_0 : i32, i32
  }
  func.func @transform_8(%arg0: i32) -> (i32, i32) {
    %c0_i32 = arith.constant 0 : i32
    %c0_i32_0 = arith.constant 0 : i32
    return %arg0, %c0_i32 : i32, i32
  }
}

</mosaic_0001>

<llo_original>
// kernel: tpu_custom_call.1
$region0: #{tpu_custom_call.1}
  #allocation0 [shape = 'u32[]', space=smem, size = 0x4, offset = 0x4, fixed_abs, tag = 'smem constant byte address 0x4 - core index']
  #allocation1 [shape = 'u32[144,128]{1,0:T(1,128)}', space=vmem, size = 0x12000, scoped, tag = 'internal scratch']
  %s0 = inlined_call_operand.vmem [shape: s32[8,1], index: 0, kind: input, shape index: {}]
  %s1 = inlined_call_operand.vmem [shape: bf16[768,64], index: 1, kind: input, shape index: {}]
  %s2 = inlined_call_operand.vmem [shape: bf16[64,256], index: 2, kind: input, shape index: {}]
  %s3 = inlined_call_operand.vmem [shape: f32[1,256], index: 3, kind: input, shape index: {}]
  %s4 = inlined_call_operand.vmem [shape: bf16[256,256], index: 4, kind: input, shape index: {}]
  %s5 = inlined_call_operand.vmem [shape: f32[1,256], index: 5, kind: input, shape index: {}]
  %s6 = inlined_call_operand.vmem [shape: bf16[256,128], index: 6, kind: input, shape index: {}]
  %s7 = inlined_call_operand.vmem [shape: f32[1,128], index: 7, kind: input, shape index: {}]
  %s8 = inlined_call_operand.hbm [shape: f32[8,128], index: 8, kind: output, shape index: {}]
  %s9 = sld [smem:[#allocation0]]
  $region42: #{tpu_custom_call.1} parent=0
    _
  %s11 = ssub.s32 1, %s9
  %s12 = scalar_select 0, %s11, %s9
  $region1: #{tpu_custom_call.1} parent=0
    #allocation2 [shape = 'u8[4096]{0}', space=vmem, size = 0x1000, scoped, tag = 'output window, operand 0, single buffered']
    #allocation3 [shape = 's32[1]{0}', space=sflag, size = 0x4, scoped, tag = 'scoped memory for tpu_custom_call.1']
    %13 = vsyncpa [#allocation3], 0
    // Predicated region
    $region2: #{tpu_custom_call.1} parent=1 // pred_check
      _
    $region3: #{tpu_custom_call.1} parent=1 // pred_check_branch
      %15 = sbr.rel (0) target = $region5
    $region4: #{tpu_custom_call.1} parent=1 // pred_region
      _
    $region5: #{tpu_custom_call.1} parent=1 // pred_fallthru
      _
    // Predicated region
    $region6: #{tpu_custom_call.1} parent=1 // pred_check
      _
    $region7: #{tpu_custom_call.1} parent=1 // pred_check_branch
      %17 = sbr.rel (0) target = $region9
    $region8: #{tpu_custom_call.1} parent=1 // pred_region
      _
    $region9: #{tpu_custom_call.1} parent=1 // pred_fallthru
      _
    // Predicated region
    $region10: #{tpu_custom_call.1} parent=1 // pred_check
      _
    $region11: #{tpu_custom_call.1} parent=1 // pred_check_branch
      %19 = sbr.rel (0) target = $region13
    $region12: #{tpu_custom_call.1} parent=1 // pred_region
      _
    $region13: #{tpu_custom_call.1} parent=1 // pred_fallthru
      _
    // Predicated region
    $region14: #{tpu_custom_call.1} parent=1 // pred_check
      _
    $region15: #{tpu_custom_call.1} parent=1 // pred_check_branch
      %21 = sbr.rel (0) target = $region17
    $region16: #{tpu_custom_call.1} parent=1 // pred_region
      _
    $region17: #{tpu_custom_call.1} parent=1 // pred_fallthru
      _
    // Predicated region
    $region18: #{tpu_custom_call.1} parent=1 // pred_check
      _
    $region19: #{tpu_custom_call.1} parent=1 // pred_check_branch
      %23 = sbr.rel (0) target = $region21
    $region20: #{tpu_custom_call.1} parent=1 // pred_region
      _
    $region21: #{tpu_custom_call.1} parent=1 // pred_fallthru
      _
    // Predicated region
    $region22: #{tpu_custom_call.1} parent=1 // pred_check
      _
    $region23: #{tpu_custom_call.1} parent=1 // pred_check_branch
      %25 = sbr.rel (0) target = $region25
    $region24: #{tpu_custom_call.1} parent=1 // pred_region
      _
    $region25: #{tpu_custom_call.1} parent=1 // pred_fallthru
      _
    // Predicated region
    $region26: #{tpu_custom_call.1} parent=1 // pred_check
      _
    $region27: #{tpu_custom_call.1} parent=1 // pred_check_branch
      %27 = sbr.rel (0) target = $region29
    $region28: #{tpu_custom_call.1} parent=1 // pred_region
      _
    $region29: #{tpu_custom_call.1} parent=1 // pred_fallthru
      _
    // Predicated region
    $region30: #{tpu_custom_call.1} parent=1 // pred_check
      _
    $region31: #{tpu_custom_call.1} parent=1 // pred_check_branch
      %29 = sbr.rel (0) target = $region33
    $region32: #{tpu_custom_call.1} parent=1 // pred_region
      _
    $region33: #{tpu_custom_call.1} parent=1 // pred_fallthru
      _
    %v31 = vld [vmem:[%s0] sm:$0xff]
    %v32 = vlaneseq
    %v33 = vand.u32 %v32, 127
    %v34 = vadd.s32 %v33, 128
    %v35 = vadd.s32 %v33, 256
    %v36 = vadd.s32 %v33, 384
    %v37 = vadd.s32 %v33, 512
    %v38 = vadd.s32 %v33, 640
    %39 = vset.pattern.permute.xlu0 0
    %40 = vperm.xlu0 %39, %v31
    %v41 = vpop.permute.xlu0 %40
    %vm42 = vcmp.eq.s32.totalorder %v33, %v41
    %vm43 = vcmp.eq.s32.totalorder %v34, %v41
    %vm44 = vcmp.eq.s32.totalorder %v35, %v41
    %vm45 = vcmp.eq.s32.totalorder %v36, %v41
    %vm46 = vcmp.eq.s32.totalorder %v37, %v41
    %vm47 = vcmp.eq.s32.totalorder %v38, %v41
    %v48 = vsel %vm42, 1, 0
    %v49 = vsel %vm43, 1, 0
    %v50 = vsel %vm44, 1, 0
    %v51 = vsel %vm45, 1, 0
    %v52 = vsel %vm46, 1, 0
    %v53 = vsel %vm47, 1, 0
    %v54 = vcvt.s32.f32 %v48
    %v55 = vcvt.s32.f32 %v49
    %v56 = vcvt.s32.f32 %v50
    %v57 = vcvt.s32.f32 %v51
    %v58 = vcvt.s32.f32 %v52
    %v59 = vcvt.s32.f32 %v53
    %v60 = vpack.c.bf16 %v54, %v54
    %v61 = vpack.c.bf16 %v55, %v55
    %v62 = vpack.c.bf16 %v56, %v56
    %v63 = vpack.c.bf16 %v57, %v57
    %v64 = vpack.c.bf16 %v58, %v58
    %v65 = vpack.c.bf16 %v59, %v59
    %v66 = vld [vmem:[%s1] sm:$0xf]
    %v67 = vld [vmem:[%s1 + $0x4] sm:$0xf]
    %v68 = vld [vmem:[%s1 + $0x8] sm:$0xf]
    %v69 = vld [vmem:[%s1 + $0xc] sm:$0xf]
    %v70 = vld [vmem:[%s1 + $0x10] sm:$0xf]
    %v71 = vld [vmem:[%s1 + $0x14] sm:$0xf]
    %v72 = vld [vmem:[%s1 + $0x18] sm:$0xf]
    %v73 = vld [vmem:[%s1 + $0x1c] sm:$0xf]
    %v74 = vld [vmem:[%s1 + $0x20] sm:$0xf]
    %v75 = vld [vmem:[%s1 + $0x24] sm:$0xf]
    %v76 = vld [vmem:[%s1 + $0x28] sm:$0xf]
    %v77 = vld [vmem:[%s1 + $0x2c] sm:$0xf]
    %v78 = vld [vmem:[%s1 + $0x30] sm:$0xf]
    %v79 = vld [vmem:[%s1 + $0x34] sm:$0xf]
    %v80 = vld [vmem:[%s1 + $0x38] sm:$0xf]
    %v81 = vld [vmem:[%s1 + $0x3c] sm:$0xf]
    %v82 = vld [vmem:[%s1 + $0x40] sm:$0xf]
    %v83 = vld [vmem:[%s1 + $0x44] sm:$0xf]
    %v84 = vld [vmem:[%s1 + $0x48] sm:$0xf]
    %v85 = vld [vmem:[%s1 + $0x4c] sm:$0xf]
    %v86 = vld [vmem:[%s1 + $0x50] sm:$0xf]
    %v87 = vld [vmem:[%s1 + $0x54] sm:$0xf]
    %v88 = vld [vmem:[%s1 + $0x58] sm:$0xf]
    %v89 = vld [vmem:[%s1 + $0x5c] sm:$0xf]
    %v90 = vld [vmem:[%s1 + $0x60] sm:$0xf]
    %v91 = vld [vmem:[%s1 + $0x64] sm:$0xf]
    %v92 = vld [vmem:[%s1 + $0x68] sm:$0xf]
    %v93 = vld [vmem:[%s1 + $0x6c] sm:$0xf]
    %v94 = vld [vmem:[%s1 + $0x70] sm:$0xf]
    %v95 = vld [vmem:[%s1 + $0x74] sm:$0xf]
    %v96 = vld [vmem:[%s1 + $0x78] sm:$0xf]
    %v97 = vld [vmem:[%s1 + $0x7c] sm:$0xf]
    %v98 = vld [vmem:[%s1 + $0x80] sm:$0xf]
    %v99 = vld [vmem:[%s1 + $0x84] sm:$0xf]
    %v100 = vld [vmem:[%s1 + $0x88] sm:$0xf]
    %v101 = vld [vmem:[%s1 + $0x8c] sm:$0xf]
    %v102 = vld [vmem:[%s1 + $0x90] sm:$0xf]
    %v103 = vld [vmem:[%s1 + $0x94] sm:$0xf]
    %v104 = vld [vmem:[%s1 + $0x98] sm:$0xf]
    %v105 = vld [vmem:[%s1 + $0x9c] sm:$0xf]
    %v106 = vld [vmem:[%s1 + $0xa0] sm:$0xf]
    %v107 = vld [vmem:[%s1 + $0xa4] sm:$0xf]
    %v108 = vld [vmem:[%s1 + $0xa8] sm:$0xf]
    %v109 = vld [vmem:[%s1 + $0xac] sm:$0xf]
    %v110 = vld [vmem:[%s1 + $0xb0] sm:$0xf]
    %v111 = vld [vmem:[%s1 + $0xb4] sm:$0xf]
    %v112 = vld [vmem:[%s1 + $0xb8] sm:$0xf]
    %v113 = vld [vmem:[%s1 + $0xbc] sm:$0xf]
    %v114 = vld [vmem:[%s1 + $0xc0] sm:$0xf]
    %v115 = vld [vmem:[%s1 + $0xc4] sm:$0xf]
    %v116 = vld [vmem:[%s1 + $0xc8] sm:$0xf]
    %v117 = vld [vmem:[%s1 + $0xcc] sm:$0xf]
    %v118 = vld [vmem:[%s1 + $0xd0] sm:$0xf]
    %v119 = vld [vmem:[%s1 + $0xd4] sm:$0xf]
    %v120 = vld [vmem:[%s1 + $0xd8] sm:$0xf]
    %v121 = vld [vmem:[%s1 + $0xdc] sm:$0xf]
    %v122 = vld [vmem:[%s1 + $0xe0] sm:$0xf]
    %v123 = vld [vmem:[%s1 + $0xe4] sm:$0xf]
    %v124 = vld [vmem:[%s1 + $0xe8] sm:$0xf]
    %v125 = vld [vmem:[%s1 + $0xec] sm:$0xf]
    %v126 = vld [vmem:[%s1 + $0xf0] sm:$0xf]
    %v127 = vld [vmem:[%s1 + $0xf4] sm:$0xf]
    %v128 = vld [vmem:[%s1 + $0xf8] sm:$0xf]
    %v129 = vld [vmem:[%s1 + $0xfc] sm:$0xf]
    %v130 = vld [vmem:[%s1 + $0x100] sm:$0xf]
    %v131 = vld [vmem:[%s1 + $0x104] sm:$0xf]
    %v132 = vld [vmem:[%s1 + $0x108] sm:$0xf]
    %v133 = vld [vmem:[%s1 + $0x10c] sm:$0xf]
    %v134 = vld [vmem:[%s1 + $0x110] sm:$0xf]
    %v135 = vld [vmem:[%s1 + $0x114] sm:$0xf]
    %v136 = vld [vmem:[%s1 + $0x118] sm:$0xf]
    %v137 = vld [vmem:[%s1 + $0x11c] sm:$0xf]
    %v138 = vld [vmem:[%s1 + $0x120] sm:$0xf]
    %v139 = vld [vmem:[%s1 + $0x124] sm:$0xf]
    %v140 = vld [vmem:[%s1 + $0x128] sm:$0xf]
    %v141 = vld [vmem:[%s1 + $0x12c] sm:$0xf]
    %v142 = vld [vmem:[%s1 + $0x130] sm:$0xf]
    %v143 = vld [vmem:[%s1 + $0x134] sm:$0xf]
    %v144 = vld [vmem:[%s1 + $0x138] sm:$0xf]
    %v145 = vld [vmem:[%s1 + $0x13c] sm:$0xf]
    %v146 = vld [vmem:[%s1 + $0x140] sm:$0xf]
    %v147 = vld [vmem:[%s1 + $0x144] sm:$0xf]
    %v148 = vld [vmem:[%s1 + $0x148] sm:$0xf]
    %v149 = vld [vmem:[%s1 + $0x14c] sm:$0xf]
    %v150 = vld [vmem:[%s1 + $0x150] sm:$0xf]
    %v151 = vld [vmem:[%s1 + $0x154] sm:$0xf]
    %v152 = vld [vmem:[%s1 + $0x158] sm:$0xf]
    %v153 = vld [vmem:[%s1 + $0x15c] sm:$0xf]
    %v154 = vld [vmem:[%s1 + $0x160] sm:$0xf]
    %v155 = vld [vmem:[%s1 + $0x164] sm:$0xf]
    %v156 = vld [vmem:[%s1 + $0x168] sm:$0xf]
    %v157 = vld [vmem:[%s1 + $0x16c] sm:$0xf]
    %v158 = vld [vmem:[%s1 + $0x170] sm:$0xf]
    %v159 = vld [vmem:[%s1 + $0x174] sm:$0xf]
    %v160 = vld [vmem:[%s1 + $0x178] sm:$0xf]
    %v161 = vld [vmem:[%s1 + $0x17c] sm:$0xf]
    %v258 = vunpack.c.l.b16 %v66
    %v259 = vunpack.c.l.b16 %v67
    %v260 = vunpack.c.l.b16 %v68
    %v261 = vunpack.c.l.b16 %v69
    %v262 = vunpack.c.l.b16 %v70
    %v263 = vunpack.c.l.b16 %v71
    %v264 = vunpack.c.l.b16 %v72
    %v265 = vunpack.c.l.b16 %v73
    %v266 = vunpack.c.l.b16 %v74
    %v267 = vunpack.c.l.b16 %v75
    %v268 = vunpack.c.l.b16 %v76
    %v269 = vunpack.c.l.b16 %v77
    %v270 = vunpack.c.l.b16 %v78
    %v271 = vunpack.c.l.b16 %v79
    %v272 = vunpack.c.l.b16 %v80
    %v273 = vunpack.c.l.b16 %v81
    %v274 = vunpack.c.l.b16 %v82
    %v275 = vunpack.c.l.b16 %v83
    %v276 = vunpack.c.l.b16 %v84
    %v277 = vunpack.c.l.b16 %v85
    %v278 = vunpack.c.l.b16 %v86
    %v279 = vunpack.c.l.b16 %v87
    %v280 = vunpack.c.l.b16 %v88
    %v281 = vunpack.c.l.b16 %v89
    %v282 = vunpack.c.l.b16 %v90
    %v283 = vunpack.c.l.b16 %v91
    %v284 = vunpack.c.l.b16 %v92
    %v285 = vunpack.c.l.b16 %v93
    %v286 = vunpack.c.l.b16 %v94
    %v287 = vunpack.c.l.b16 %v95
    %v288 = vunpack.c.l.b16 %v96
    %v289 = vunpack.c.l.b16 %v97
    %v290 = vunpack.c.l.b16 %v98
    %v291 = vunpack.c.l.b16 %v99
    %v292 = vunpack.c.l.b16 %v100
    %v293 = vunpack.c.l.b16 %v101
    %v294 = vunpack.c.l.b16 %v102
    %v295 = vunpack.c.l.b16 %v103
    %v296 = vunpack.c.l.b16 %v104
    %v297 = vunpack.c.l.b16 %v105
    %v298 = vunpack.c.l.b16 %v106
    %v299 = vunpack.c.l.b16 %v107
    %v300 = vunpack.c.l.b16 %v108
    %v301 = vunpack.c.l.b16 %v109
    %v302 = vunpack.c.l.b16 %v110
    %v303 = vunpack.c.l.b16 %v111
    %v304 = vunpack.c.l.b16 %v112
    %v305 = vunpack.c.l.b16 %v113
    %v306 = vunpack.c.l.b16 %v114
    %v307 = vunpack.c.l.b16 %v115
    %v308 = vunpack.c.l.b16 %v116
    %v309 = vunpack.c.l.b16 %v117
    %v310 = vunpack.c.l.b16 %v118
    %v311 = vunpack.c.l.b16 %v119
    %v312 = vunpack.c.l.b16 %v120
    %v313 = vunpack.c.l.b16 %v121
    %v314 = vunpack.c.l.b16 %v122
    %v315 = vunpack.c.l.b16 %v123
    %v316 = vunpack.c.l.b16 %v124
    %v317 = vunpack.c.l.b16 %v125
    %v318 = vunpack.c.l.b16 %v126
    %v319 = vunpack.c.l.b16 %v127
    %v320 = vunpack.c.l.b16 %v128
    %v321 = vunpack.c.l.b16 %v129
    %v322 = vunpack.c.l.b16 %v130
    %v323 = vunpack.c.l.b16 %v131
    %v324 = vunpack.c.l.b16 %v132
    %v325 = vunpack.c.l.b16 %v133
    %v326 = vunpack.c.l.b16 %v134
    %v327 = vunpack.c.l.b16 %v135
    %v328 = vunpack.c.l.b16 %v136
    %v329 = vunpack.c.l.b16 %v137
    %v330 = vunpack.c.l.b16 %v138
    %v331 = vunpack.c.l.b16 %v139
    %v332 = vunpack.c.l.b16 %v140
    %v333 = vunpack.c.l.b16 %v141
    %v334 = vunpack.c.l.b16 %v142
    %v335 = vunpack.c.l.b16 %v143
    %v336 = vunpack.c.l.b16 %v144
    %v337 = vunpack.c.l.b16 %v145
    %v338 = vunpack.c.l.b16 %v146
    %v339 = vunpack.c.l.b16 %v147
    %v340 = vunpack.c.l.b16 %v148
    %v341 = vunpack.c.l.b16 %v149
    %v342 = vunpack.c.l.b16 %v150
    %v343 = vunpack.c.l.b16 %v151
    %v344 = vunpack.c.l.b16 %v152
    %v345 = vunpack.c.l.b16 %v153
    %v346 = vunpack.c.l.b16 %v154
    %v347 = vunpack.c.l.b16 %v155
    %v348 = vunpack.c.l.b16 %v156
    %v349 = vunpack.c.l.b16 %v157
    %v350 = vunpack.c.l.b16 %v158
    %v351 = vunpack.c.l.b16 %v159
    %v352 = vunpack.c.l.b16 %v160
    %v353 = vunpack.c.l.b16 %v161
    %v354 = vpack.c.b16 %v259, %v258
    %v355 = vpack.c.b16 %v261, %v260
    %v356 = vpack.c.b16 %v263, %v262
    %v357 = vpack.c.b16 %v265, %v264
    %v358 = vpack.c.b16 %v267, %v266
    %v359 = vpack.c.b16 %v269, %v268
    %v360 = vpack.c.b16 %v271, %v270
    %v361 = vpack.c.b16 %v273, %v272
    %v362 = vpack.c.b16 %v275, %v274
    %v363 = vpack.c.b16 %v277, %v276
    %v364 = vpack.c.b16 %v279, %v278
    %v365 = vpack.c.b16 %v281, %v280
    %v366 = vpack.c.b16 %v283, %v282
    %v367 = vpack.c.b16 %v285, %v284
    %v368 = vpack.c.b16 %v287, %v286
    %v369 = vpack.c.b16 %v289, %v288
    %v370 = vpack.c.b16 %v291, %v290
    %v371 = vpack.c.b16 %v293, %v292
    %v372 = vpack.c.b16 %v295, %v294
    %v373 = vpack.c.b16 %v297, %v296
    %v374 = vpack.c.b16 %v299, %v298
    %v375 = vpack.c.b16 %v301, %v300
    %v376 = vpack.c.b16 %v303, %v302
    %v377 = vpack.c.b16 %v305, %v304
    %v378 = vpack.c.b16 %v307, %v306
    %v379 = vpack.c.b16 %v309, %v308
    %v380 = vpack.c.b16 %v311, %v310
    %v381 = vpack.c.b16 %v313, %v312
    %v382 = vpack.c.b16 %v315, %v314
    %v383 = vpack.c.b16 %v317, %v316
    %v384 = vpack.c.b16 %v319, %v318
    %v385 = vpack.c.b16 %v321, %v320
    %v386 = vpack.c.b16 %v323, %v322
    %v387 = vpack.c.b16 %v325, %v324
    %v388 = vpack.c.b16 %v327, %v326
    %v389 = vpack.c.b16 %v329, %v328
    %v390 = vpack.c.b16 %v331, %v330
    %v391 = vpack.c.b16 %v333, %v332
    %v392 = vpack.c.b16 %v335, %v334
    %v393 = vpack.c.b16 %v337, %v336
    %v394 = vpack.c.b16 %v339, %v338
    %v395 = vpack.c.b16 %v341, %v340
    %v396 = vpack.c.b16 %v343, %v342
    %v397 = vpack.c.b16 %v345, %v344
    %v398 = vpack.c.b16 %v347, %v346
    %v399 = vpack.c.b16 %v349, %v348
    %v400 = vpack.c.b16 %v351, %v350
    %v401 = vpack.c.b16 %v353, %v352
    %450 = vmatprep.subr.bf16.mxu0 0
    %451 = vmatpush1.bf16.msra.mxu0 %v354
    %452 = vmatprep.subr.bf16.mxu0 0
    %453 = vmatpush1.bf16.msra.mxu0 %v355
    %454 = vmatprep.subr.bf16.mxu0 0
    %455 = vmatpush1.bf16.msra.mxu0 %v356
    %456 = vmatprep.subr.bf16.mxu0 0
    %457 = vmatpush1.bf16.msra.mxu0 %v357
    %458 = vmatprep.subr.bf16.mxu0 0
    %459 = vmatpush1.bf16.msra.mxu0 %v358
    %460 = vmatprep.subr.bf16.mxu0 0
    %461 = vmatpush1.bf16.msra.mxu0 %v359
    %462 = vmatprep.subr.bf16.mxu0 0
    %463 = vmatpush1.bf16.msra.mxu0 %v360
    %464 = vmatprep.subr.bf16.mxu0 0
    %465 = vmatpush1.bf16.msra.mxu0 %v361
    %466 = vmatprep.subr.bf16.mxu0 0
    %467 = vmatpush1.bf16.msra.mxu0 %v362
    %468 = vmatprep.subr.bf16.mxu0 0
    %469 = vmatpush1.bf16.msra.mxu0 %v363
    %470 = vmatprep.subr.bf16.mxu0 0
    %471 = vmatpush1.bf16.msra.mxu0 %v364
    %472 = vmatprep.subr.bf16.mxu0 0
    %473 = vmatpush1.bf16.msra.mxu0 %v365
    %474 = vmatprep.subr.bf16.mxu0 0
    %475 = vmatpush1.bf16.msra.mxu0 %v366
    %476 = vmatprep.subr.bf16.mxu0 0
    %477 = vmatpush1.bf16.msra.mxu0 %v367
    %478 = vmatprep.subr.bf16.mxu0 0
    %479 = vmatpush1.bf16.msra.mxu0 %v368
    %480 = vmatprep.subr.bf16.mxu0 0
    %481 = vmatpush1.bf16.msra.mxu0 %v369
    %482 = vmatprep.mubr.bf16.mxu0 %v61
    %483 = vmatmul.mubr.bf16.gmra.mrb[0].mxu0 %v60
    %v484 = vpop.f32.mrb[0].mxu0
    %v485 = vadd.f32 0.0, %v484
    %v486 = vpop.f32.mrb[0].mxu0
    %v487 = vpop.f32.mrb[0].mxu0
    %v488 = vpop.f32.mrb[0].mxu0
    %489 = vdwg.mxu0
    %490 = vmatprep.subr.bf16.mxu0 0
    %491 = vmatpush1.bf16.msra.mxu0 %v370
    %492 = vmatprep.subr.bf16.mxu0 0
    %493 = vmatpush1.bf16.msra.mxu0 %v371
    %494 = vmatprep.subr.bf16.mxu0 0
    %495 = vmatpush1.bf16.msra.mxu0 %v372
    %496 = vmatprep.subr.bf16.mxu0 0
    %497 = vmatpush1.bf16.msra.mxu0 %v373
    %498 = vmatprep.subr.bf16.mxu0 0
    %499 = vmatpush1.bf16.msra.mxu0 %v374
    %500 = vmatprep.subr.bf16.mxu0 0
    %501 = vmatpush1.bf16.msra.mxu0 %v375
    %502 = vmatprep.subr.bf16.mxu0 0
    %503 = vmatpush1.bf16.msra.mxu0 %v376
    %504 = vmatprep.subr.bf16.mxu0 0
    %505 = vmatpush1.bf16.msra.mxu0 %v377
    %506 = vmatprep.subr.bf16.mxu0 0
    %507 = vmatpush1.bf16.msra.mxu0 %v378
    %508 = vmatprep.subr.bf16.mxu0 0
    %509 = vmatpush1.bf16.msra.mxu0 %v379
    %510 = vmatprep.subr.bf16.mxu0 0
    %511 = vmatpush1.bf16.msra.mxu0 %v380
    %512 = vmatprep.subr.bf16.mxu0 0
    %513 = vmatpush1.bf16.msra.mxu0 %v381
    %514 = vmatprep.subr.bf16.mxu0 0
    %515 = vmatpush1.bf16.msra.mxu0 %v382
    %516 = vmatprep.subr.bf16.mxu0 0
    %517 = vmatpush1.bf16.msra.mxu0 %v383
    %518 = vmatprep.subr.bf16.mxu0 0
    %519 = vmatpush1.bf16.msra.mxu0 %v384
    %520 = vmatprep.subr.bf16.mxu0 0
    %521 = vmatpush1.bf16.msra.mxu0 %v385
    %522 = vmatprep.mubr.bf16.mxu0 %v63
    %523 = vmatmul.mubr.bf16.gmra.mrb[0].mxu0 %v62
    %v524 = vpop.f32.mrb[0].mxu0
    %v525 = vadd.f32 %v485, %v524
    %v526 = vpop.f32.mrb[0].mxu0
    %v527 = vpop.f32.mrb[0].mxu0
    %v528 = vpop.f32.mrb[0].mxu0
    %529 = vdwg.mxu0
    %530 = vmatprep.subr.bf16.mxu0 0
    %531 = vmatpush1.bf16.msra.mxu0 %v386
    %532 = vmatprep.subr.bf16.mxu0 0
    %533 = vmatpush1.bf16.msra.mxu0 %v387
    %534 = vmatprep.subr.bf16.mxu0 0
    %535 = vmatpush1.bf16.msra.mxu0 %v388
    %536 = vmatprep.subr.bf16.mxu0 0
    %537 = vmatpush1.bf16.msra.mxu0 %v389
    %538 = vmatprep.subr.bf16.mxu0 0
    %539 = vmatpush1.bf16.msra.mxu0 %v390
    %540 = vmatprep.subr.bf16.mxu0 0
    %541 = vmatpush1.bf16.msra.mxu0 %v391
    %542 = vmatprep.subr.bf16.mxu0 0
    %543 = vmatpush1.bf16.msra.mxu0 %v392
    %544 = vmatprep.subr.bf16.mxu0 0
    %545 = vmatpush1.bf16.msra.mxu0 %v393
    %546 = vmatprep.subr.bf16.mxu0 0
    %547 = vmatpush1.bf16.msra.mxu0 %v394
    %548 = vmatprep.subr.bf16.mxu0 0
    %549 = vmatpush1.bf16.msra.mxu0 %v395
    %550 = vmatprep.subr.bf16.mxu0 0
    %551 = vmatpush1.bf16.msra.mxu0 %v396
    %552 = vmatprep.subr.bf16.mxu0 0
    %553 = vmatpush1.bf16.msra.mxu0 %v397
    %554 = vmatprep.subr.bf16.mxu0 0
    %555 = vmatpush1.bf16.msra.mxu0 %v398
    %556 = vmatprep.subr.bf16.mxu0 0
    %557 = vmatpush1.bf16.msra.mxu0 %v399
    %558 = vmatprep.subr.bf16.mxu0 0
    %559 = vmatpush1.bf16.msra.mxu0 %v400
    %560 = vmatprep.subr.bf16.mxu0 0
    %561 = vmatpush1.bf16.msra.mxu0 %v401
    %562 = vmatprep.mubr.bf16.mxu0 %v65
    %563 = vmatmul.mubr.bf16.gmra.mrb[0].mxu0 %v64
    %v564 = vpop.f32.mrb[0].mxu0
    %v565 = vadd.f32 %v525, %v564
    %v566 = vpop.f32.mrb[0].mxu0
    %v567 = vpop.f32.mrb[0].mxu0
    %v568 = vpop.f32.mrb[0].mxu0
    %569 = vdwg.mxu0
    %v570 = vpack.c.bf16 %v565, %v565
    %v571 = vld [vmem:[%s2] sm:$0xff]
    %v572 = vld [vmem:[%s2 + $0x8] sm:$0xff]
    %v573 = vld [vmem:[%s2 + $0x10] sm:$0xff]
    %v574 = vld [vmem:[%s2 + $0x18] sm:$0xff]
    %v575 = vld [vmem:[%s2 + $0x20] sm:$0xff]
    %v576 = vld [vmem:[%s2 + $0x28] sm:$0xff]
    %v577 = vld [vmem:[%s2 + $0x30] sm:$0xff]
    %v578 = vld [vmem:[%s2 + $0x38] sm:$0xff]
    %v579 = vld [vmem:[%s3] sm:$0x3]
    %v581 = vlaneseq
    %v582 = vshrl.u32 %v581, 7
    %v583 = vsub.s32 0, %v582
    %v584 = vrot.slane %v579, %v583
    %v585 = vlaneseq
    %v586 = vshrl.u32 %v585, 7
    %v587 = vsub.s32 1, %v586
    %v588 = vrot.slane %v579, %v587
    %v599 = vunpack.c.l.b16 %v571
    %v600 = vunpack.c.h.b16 %v571
    %v601 = vunpack.c.l.b16 %v572
    %v602 = vunpack.c.h.b16 %v572
    %v603 = vunpack.c.l.b16 %v573
    %v604 = vunpack.c.h.b16 %v573
    %v605 = vunpack.c.l.b16 %v574
    %v606 = vunpack.c.h.b16 %v574
    %v607 = vunpack.c.l.b16 %v575
    %v608 = vunpack.c.h.b16 %v575
    %v609 = vunpack.c.l.b16 %v576
    %v610 = vunpack.c.h.b16 %v576
    %v611 = vunpack.c.l.b16 %v577
    %v612 = vunpack.c.h.b16 %v577
    %v613 = vunpack.c.l.b16 %v578
    %v614 = vunpack.c.h.b16 %v578
    %v615 = vpack.c.b16 %v601, %v599
    %v616 = vpack.c.b16 %v602, %v600
    %v617 = vpack.c.b16 %v605, %v603
    %v618 = vpack.c.b16 %v606, %v604
    %v619 = vpack.c.b16 %v609, %v607
    %v620 = vpack.c.b16 %v610, %v608
    %v621 = vpack.c.b16 %v613, %v611
    %v622 = vpack.c.b16 %v614, %v612
    %vm631 = vcmask 523264
    %v633 = vsel %vm631, %v570, 0
    %635 = vmatprep.subr.bf16.mxu0 %v616
    %636 = vmatpush1.bf16.msra.mxu0 %v615
    %637 = vmatprep.subr.bf16.mxu0 %v618
    %638 = vmatpush1.bf16.msra.mxu0 %v617
    %639 = vmatprep.subr.bf16.mxu0 %v620
    %640 = vmatpush1.bf16.msra.mxu0 %v619
    %641 = vmatprep.subr.bf16.mxu0 %v622
    %642 = vmatpush1.bf16.msra.mxu0 %v621
    %643 = vmatprep.subr.bf16.mxu0 0
    %644 = vmatpush1.bf16.msra.mxu0 0
    %645 = vmatprep.subr.bf16.mxu0 0
    %646 = vmatpush1.bf16.msra.mxu0 0
    %647 = vmatprep.subr.bf16.mxu0 0
    %648 = vmatpush1.bf16.msra.mxu0 0
    %649 = vmatprep.subr.bf16.mxu0 0
    %650 = vmatpush1.bf16.msra.mxu0 0
    %651 = vmatprep.subr.bf16.mxu0 0
    %652 = vmatpush1.bf16.msra.mxu0 0
    %653 = vmatprep.subr.bf16.mxu0 0
    %654 = vmatpush1.bf16.msra.mxu0 0
    %655 = vmatprep.subr.bf16.mxu0 0
    %656 = vmatpush1.bf16.msra.mxu0 0
    %657 = vmatprep.subr.bf16.mxu0 0
    %658 = vmatpush1.bf16.msra.mxu0 0
    %659 = vmatprep.subr.bf16.mxu0 0
    %660 = vmatpush1.bf16.msra.mxu0 0
    %661 = vmatprep.subr.bf16.mxu0 0
    %662 = vmatpush1.bf16.msra.mxu0 0
    %663 = vmatprep.subr.bf16.mxu0 0
    %664 = vmatpush1.bf16.msra.mxu0 0
    %665 = vmatprep.subr.bf16.mxu0 0
    %666 = vmatpush1.bf16.msra.mxu0 0
    %667 = vmatprep.mubr.bf16.mxu0 0
    %668 = vmatmul.mubr.bf16.gmra.mrb[0].mxu0 %v633
    %v669 = vpop.f32.mrb[0].mxu0
    %v670 = vadd.f32 %v584, %v669
    %v671 = vpop.f32.mrb[0].mxu0
    %v672 = vadd.f32 %v588, %v671
    %v673 = vpop.f32.mrb[0].mxu0
    %v674 = vpop.f32.mrb[0].mxu0
    %675 = vdwg.mxu0
    %v676 = vmax.f32 %v670, 0.0
    %v677 = vmax.f32 %v672, 0.0
    %v678 = vpack.c.bf16 %v676, %v676
    %v679 = vpack.c.bf16 %v677, %v677
    %v680 = vld [vmem:[%s4] sm:$0xff]
    %v681 = vld [vmem:[%s4 + $0x8] sm:$0xff]
    %v682 = vld [vmem:[%s4 + $0x10] sm:$0xff]
    %v683 = vld [vmem:[%s4 + $0x18] sm:$0xff]
    %v684 = vld [vmem:[%s4 + $0x20] sm:$0xff]
    %v685 = vld [vmem:[%s4 + $0x28] sm:$0xff]
    %v686 = vld [vmem:[%s4 + $0x30] sm:$0xff]
    %v687 = vld [vmem:[%s4 + $0x38] sm:$0xff]
    %v688 = vld [vmem:[%s4 + $0x40] sm:$0xff]
    %v689 = vld [vmem:[%s4 + $0x48] sm:$0xff]
    %v690 = vld [vmem:[%s4 + $0x50] sm:$0xff]
    %v691 = vld [vmem:[%s4 + $0x58] sm:$0xff]
    %v692 = vld [vmem:[%s4 + $0x60] sm:$0xff]
    %v693 = vld [vmem:[%s4 + $0x68] sm:$0xff]
    %v694 = vld [vmem:[%s4 + $0x70] sm:$0xff]
    %v695 = vld [vmem:[%s4 + $0x78] sm:$0xff]
    %v696 = vld [vmem:[%s4 + $0x80] sm:$0xff]
    %v697 = vld [vmem:[%s4 + $0x88] sm:$0xff]
    %v698 = vld [vmem:[%s4 + $0x90] sm:$0xff]
    %v699 = vld [vmem:[%s4 + $0x98] sm:$0xff]
    %v700 = vld [vmem:[%s4 + $0xa0] sm:$0xff]
    %v701 = vld [vmem:[%s4 + $0xa8] sm:$0xff]
    %v702 = vld [vmem:[%s4 + $0xb0] sm:$0xff]
    %v703 = vld [vmem:[%s4 + $0xb8] sm:$0xff]
    %v704 = vld [vmem:[%s4 + $0xc0] sm:$0xff]
    %v705 = vld [vmem:[%s4 + $0xc8] sm:$0xff]
    %v706 = vld [vmem:[%s4 + $0xd0] sm:$0xff]
    %v707 = vld [vmem:[%s4 + $0xd8] sm:$0xff]
    %v708 = vld [vmem:[%s4 + $0xe0] sm:$0xff]
    %v709 = vld [vmem:[%s4 + $0xe8] sm:$0xff]
    %v710 = vld [vmem:[%s4 + $0xf0] sm:$0xff]
    %v711 = vld [vmem:[%s4 + $0xf8] sm:$0xff]
    %v712 = vld [vmem:[%s5] sm:$0x3]
    %v714 = vlaneseq
    %v715 = vshrl.u32 %v714, 7
    %v716 = vsub.s32 0, %v715
    %v717 = vrot.slane %v712, %v716
    %v718 = vlaneseq
    %v719 = vshrl.u32 %v718, 7
    %v720 = vsub.s32 1, %v719
    %v721 = vrot.slane %v712, %v720
    %v756 = vunpack.c.l.b16 %v680
    %v757 = vunpack.c.h.b16 %v680
    %v758 = vunpack.c.l.b16 %v681
    %v759 = vunpack.c.h.b16 %v681
    %v760 = vunpack.c.l.b16 %v682
    %v761 = vunpack.c.h.b16 %v682
    %v762 = vunpack.c.l.b16 %v683
    %v763 = vunpack.c.h.b16 %v683
    %v764 = vunpack.c.l.b16 %v684
    %v765 = vunpack.c.h.b16 %v684
    %v766 = vunpack.c.l.b16 %v685
    %v767 = vunpack.c.h.b16 %v685
    %v768 = vunpack.c.l.b16 %v686
    %v769 = vunpack.c.h.b16 %v686
    %v770 = vunpack.c.l.b16 %v687
    %v771 = vunpack.c.h.b16 %v687
    %v772 = vunpack.c.l.b16 %v688
    %v773 = vunpack.c.h.b16 %v688
    %v774 = vunpack.c.l.b16 %v689
    %v775 = vunpack.c.h.b16 %v689
    %v776 = vunpack.c.l.b16 %v690
    %v777 = vunpack.c.h.b16 %v690
    %v778 = vunpack.c.l.b16 %v691
    %v779 = vunpack.c.h.b16 %v691
    %v780 = vunpack.c.l.b16 %v692
    %v781 = vunpack.c.h.b16 %v692
    %v782 = vunpack.c.l.b16 %v693
    %v783 = vunpack.c.h.b16 %v693
    %v784 = vunpack.c.l.b16 %v694
    %v785 = vunpack.c.h.b16 %v694
    %v786 = vunpack.c.l.b16 %v695
    %v787 = vunpack.c.h.b16 %v695
    %v788 = vunpack.c.l.b16 %v696
    %v789 = vunpack.c.h.b16 %v696
    %v790 = vunpack.c.l.b16 %v697
    %v791 = vunpack.c.h.b16 %v697
    %v792 = vunpack.c.l.b16 %v698
    %v793 = vunpack.c.h.b16 %v698
    %v794 = vunpack.c.l.b16 %v699
    %v795 = vunpack.c.h.b16 %v699
    %v796 = vunpack.c.l.b16 %v700
    %v797 = vunpack.c.h.b16 %v700
    %v798 = vunpack.c.l.b16 %v701
    %v799 = vunpack.c.h.b16 %v701
    %v800 = vunpack.c.l.b16 %v702
    %v801 = vunpack.c.h.b16 %v702
    %v802 = vunpack.c.l.b16 %v703
    %v803 = vunpack.c.h.b16 %v703
    %v804 = vunpack.c.l.b16 %v704
    %v805 = vunpack.c.h.b16 %v704
    %v806 = vunpack.c.l.b16 %v705
    %v807 = vunpack.c.h.b16 %v705
    %v808 = vunpack.c.l.b16 %v706
    %v809 = vunpack.c.h.b16 %v706
    %v810 = vunpack.c.l.b16 %v707
    %v811 = vunpack.c.h.b16 %v707
    %v812 = vunpack.c.l.b16 %v708
    %v813 = vunpack.c.h.b16 %v708
    %v814 = vunpack.c.l.b16 %v709
    %v815 = vunpack.c.h.b16 %v709
    %v816 = vunpack.c.l.b16 %v710
    %v817 = vunpack.c.h.b16 %v710
    %v818 = vunpack.c.l.b16 %v711
    %v819 = vunpack.c.h.b16 %v711
    %v820 = vpack.c.b16 %v758, %v756
    %v821 = vpack.c.b16 %v759, %v757
    %v822 = vpack.c.b16 %v762, %v760
    %v823 = vpack.c.b16 %v763, %v761
    %v824 = vpack.c.b16 %v766, %v764
    %v825 = vpack.c.b16 %v767, %v765
    %v826 = vpack.c.b16 %v770, %v768
    %v827 = vpack.c.b16 %v771, %v769
    %v828 = vpack.c.b16 %v774, %v772
    %v829 = vpack.c.b16 %v775, %v773
    %v830 = vpack.c.b16 %v778, %v776
    %v831 = vpack.c.b16 %v779, %v777
    %v832 = vpack.c.b16 %v782, %v780
    %v833 = vpack.c.b16 %v783, %v781
    %v834 = vpack.c.b16 %v786, %v784
    %v835 = vpack.c.b16 %v787, %v785
    %v836 = vpack.c.b16 %v790, %v788
    %v837 = vpack.c.b16 %v791, %v789
    %v838 = vpack.c.b16 %v794, %v792
    %v839 = vpack.c.b16 %v795, %v793
    %v840 = vpack.c.b16 %v798, %v796
    %v841 = vpack.c.b16 %v799, %v797
    %v842 = vpack.c.b16 %v802, %v800
    %v843 = vpack.c.b16 %v803, %v801
    %v844 = vpack.c.b16 %v806, %v804
    %v845 = vpack.c.b16 %v807, %v805
    %v846 = vpack.c.b16 %v810, %v808
    %v847 = vpack.c.b16 %v811, %v809
    %v848 = vpack.c.b16 %v814, %v812
    %v849 = vpack.c.b16 %v815, %v813
    %v850 = vpack.c.b16 %v818, %v816
    %v851 = vpack.c.b16 %v819, %v817
    %884 = vmatprep.subr.bf16.mxu0 %v821
    %885 = vmatpush1.bf16.msra.mxu0 %v820
    %886 = vmatprep.subr.bf16.mxu0 %v823
    %887 = vmatpush1.bf16.msra.mxu0 %v822
    %888 = vmatprep.subr.bf16.mxu0 %v825
    %889 = vmatpush1.bf16.msra.mxu0 %v824
    %890 = vmatprep.subr.bf16.mxu0 %v827
    %891 = vmatpush1.bf16.msra.mxu0 %v826
    %892 = vmatprep.subr.bf16.mxu0 %v829
    %893 = vmatpush1.bf16.msra.mxu0 %v828
    %894 = vmatprep.subr.bf16.mxu0 %v831
    %895 = vmatpush1.bf16.msra.mxu0 %v830
    %896 = vmatprep.subr.bf16.mxu0 %v833
    %897 = vmatpush1.bf16.msra.mxu0 %v832
    %898 = vmatprep.subr.bf16.mxu0 %v835
    %899 = vmatpush1.bf16.msra.mxu0 %v834
    %900 = vmatprep.subr.bf16.mxu0 %v837
    %901 = vmatpush1.bf16.msra.mxu0 %v836
    %902 = vmatprep.subr.bf16.mxu0 %v839
    %903 = vmatpush1.bf16.msra.mxu0 %v838
    %904 = vmatprep.subr.bf16.mxu0 %v841
    %905 = vmatpush1.bf16.msra.mxu0 %v840
    %906 = vmatprep.subr.bf16.mxu0 %v843
    %907 = vmatpush1.bf16.msra.mxu0 %v842
    %908 = vmatprep.subr.bf16.mxu0 %v845
    %909 = vmatpush1.bf16.msra.mxu0 %v844
    %910 = vmatprep.subr.bf16.mxu0 %v847
    %911 = vmatpush1.bf16.msra.mxu0 %v846
    %912 = vmatprep.subr.bf16.mxu0 %v849
    %913 = vmatpush1.bf16.msra.mxu0 %v848
    %914 = vmatprep.subr.bf16.mxu0 %v851
    %915 = vmatpush1.bf16.msra.mxu0 %v850
    %916 = vmatprep.mubr.bf16.mxu0 %v679
    %917 = vmatmul.mubr.bf16.gmra.mrb[0].mxu0 %v678
    %v918 = vpop.f32.mrb[0].mxu0
    %v919 = vadd.f32 %v717, %v918
    %v920 = vpop.f32.mrb[0].mxu0
    %v921 = vadd.f32 %v721, %v920
    %v922 = vpop.f32.mrb[0].mxu0
    %v923 = vpop.f32.mrb[0].mxu0
    %924 = vdwg.mxu0
    %v925 = vmax.f32 %v919, 0.0
    %v926 = vmax.f32 %v921, 0.0
    %v927 = vpack.c.bf16 %v925, %v925
    %v928 = vpack.c.bf16 %v926, %v926
    %v929 = vld [vmem:[%s6] sm:$0xf]
    %v930 = vld [vmem:[%s6 + $0x4] sm:$0xf]
    %v931 = vld [vmem:[%s6 + $0x8] sm:$0xf]
    %v932 = vld [vmem:[%s6 + $0xc] sm:$0xf]
    %v933 = vld [vmem:[%s6 + $0x10] sm:$0xf]
    %v934 = vld [vmem:[%s6 + $0x14] sm:$0xf]
    %v935 = vld [vmem:[%s6 + $0x18] sm:$0xf]
    %v936 = vld [vmem:[%s6 + $0x1c] sm:$0xf]
    %v937 = vld [vmem:[%s6 + $0x20] sm:$0xf]
    %v938 = vld [vmem:[%s6 + $0x24] sm:$0xf]
    %v939 = vld [vmem:[%s6 + $0x28] sm:$0xf]
    %v940 = vld [vmem:[%s6 + $0x2c] sm:$0xf]
    %v941 = vld [vmem:[%s6 + $0x30] sm:$0xf]
    %v942 = vld [vmem:[%s6 + $0x34] sm:$0xf]
    %v943 = vld [vmem:[%s6 + $0x38] sm:$0xf]
    %v944 = vld [vmem:[%s6 + $0x3c] sm:$0xf]
    %v945 = vld [vmem:[%s6 + $0x40] sm:$0xf]
    %v946 = vld [vmem:[%s6 + $0x44] sm:$0xf]
    %v947 = vld [vmem:[%s6 + $0x48] sm:$0xf]
    %v948 = vld [vmem:[%s6 + $0x4c] sm:$0xf]
    %v949 = vld [vmem:[%s6 + $0x50] sm:$0xf]
    %v950 = vld [vmem:[%s6 + $0x54] sm:$0xf]
    %v951 = vld [vmem:[%s6 + $0x58] sm:$0xf]
    %v952 = vld [vmem:[%s6 + $0x5c] sm:$0xf]
    %v953 = vld [vmem:[%s6 + $0x60] sm:$0xf]
    %v954 = vld [vmem:[%s6 + $0x64] sm:$0xf]
    %v955 = vld [vmem:[%s6 + $0x68] sm:$0xf]
    %v956 = vld [vmem:[%s6 + $0x6c] sm:$0xf]
    %v957 = vld [vmem:[%s6 + $0x70] sm:$0xf]
    %v958 = vld [vmem:[%s6 + $0x74] sm:$0xf]
    %v959 = vld [vmem:[%s6 + $0x78] sm:$0xf]
    %v960 = vld [vmem:[%s6 + $0x7c] sm:$0xf]
    %v961 = vld [vmem:[%s7] sm:$0x1]
    %v963 = vlaneseq
    %v964 = vshrl.u32 %v963, 7
    %v965 = vsub.s32 0, %v964
    %v966 = vrot.slane %v961, %v965
    %v1000 = vunpack.c.l.b16 %v929
    %v1001 = vunpack.c.l.b16 %v930
    %v1002 = vunpack.c.l.b16 %v931
    %v1003 = vunpack.c.l.b16 %v932
    %v1004 = vunpack.c.l.b16 %v933
    %v1005 = vunpack.c.l.b16 %v934
    %v1006 = vunpack.c.l.b16 %v935
    %v1007 = vunpack.c.l.b16 %v936
    %v1008 = vunpack.c.l.b16 %v937
    %v1009 = vunpack.c.l.b16 %v938
    %v1010 = vunpack.c.l.b16 %v939
    %v1011 = vunpack.c.l.b16 %v940
    %v1012 = vunpack.c.l.b16 %v941
    %v1013 = vunpack.c.l.b16 %v942
    %v1014 = vunpack.c.l.b16 %v943
    %v1015 = vunpack.c.l.b16 %v944
    %v1016 = vunpack.c.l.b16 %v945
    %v1017 = vunpack.c.l.b16 %v946
    %v1018 = vunpack.c.l.b16 %v947
    %v1019 = vunpack.c.l.b16 %v948
    %v1020 = vunpack.c.l.b16 %v949
    %v1021 = vunpack.c.l.b16 %v950
    %v1022 = vunpack.c.l.b16 %v951
    %v1023 = vunpack.c.l.b16 %v952
    %v1024 = vunpack.c.l.b16 %v953
    %v1025 = vunpack.c.l.b16 %v954
    %v1026 = vunpack.c.l.b16 %v955
    %v1027 = vunpack.c.l.b16 %v956
    %v1028 = vunpack.c.l.b16 %v957
    %v1029 = vunpack.c.l.b16 %v958
    %v1030 = vunpack.c.l.b16 %v959
    %v1031 = vunpack.c.l.b16 %v960
    %v1032 = vpack.c.b16 %v1001, %v1000
    %v1033 = vpack.c.b16 %v1003, %v1002
    %v1034 = vpack.c.b16 %v1005, %v1004
    %v1035 = vpack.c.b16 %v1007, %v1006
    %v1036 = vpack.c.b16 %v1009, %v1008
    %v1037 = vpack.c.b16 %v1011, %v1010
    %v1038 = vpack.c.b16 %v1013, %v1012
    %v1039 = vpack.c.b16 %v1015, %v1014
    %v1040 = vpack.c.b16 %v1017, %v1016
    %v1041 = vpack.c.b16 %v1019, %v1018
    %v1042 = vpack.c.b16 %v1021, %v1020
    %v1043 = vpack.c.b16 %v1023, %v1022
    %v1044 = vpack.c.b16 %v1025, %v1024
    %v1045 = vpack.c.b16 %v1027, %v1026
    %v1046 = vpack.c.b16 %v1029, %v1028
    %v1047 = vpack.c.b16 %v1031, %v1030
    %1064 = vmatprep.subr.bf16.mxu0 0
    %1065 = vmatpush1.bf16.msra.mxu0 %v1032
    %1066 = vmatprep.subr.bf16.mxu0 0
    %1067 = vmatpush1.bf16.msra.mxu0 %v1033
    %1068 = vmatprep.subr.bf16.mxu0 0
    %1069 = vmatpush1.bf16.msra.mxu0 %v1034
    %1070 = vmatprep.subr.bf16.mxu0 0
    %1071 = vmatpush1.bf16.msra.mxu0 %v1035
    %1072 = vmatprep.subr.bf16.mxu0 0
    %1073 = vmatpush1.bf16.msra.mxu0 %v1036
    %1074 = vmatprep.subr.bf16.mxu0 0
    %1075 = vmatpush1.bf16.msra.mxu0 %v1037
    %1076 = vmatprep.subr.bf16.mxu0 0
    %1077 = vmatpush1.bf16.msra.mxu0 %v1038
    %1078 = vmatprep.subr.bf16.mxu0 0
    %1079 = vmatpush1.bf16.msra.mxu0 %v1039
    %1080 = vmatprep.subr.bf16.mxu0 0
    %1081 = vmatpush1.bf16.msra.mxu0 %v1040
    %1082 = vmatprep.subr.bf16.mxu0 0
    %1083 = vmatpush1.bf16.msra.mxu0 %v1041
    %1084 = vmatprep.subr.bf16.mxu0 0
    %1085 = vmatpush1.bf16.msra.mxu0 %v1042
    %1086 = vmatprep.subr.bf16.mxu0 0
    %1087 = vmatpush1.bf16.msra.mxu0 %v1043
    %1088 = vmatprep.subr.bf16.mxu0 0
    %1089 = vmatpush1.bf16.msra.mxu0 %v1044
    %1090 = vmatprep.subr.bf16.mxu0 0
    %1091 = vmatpush1.bf16.msra.mxu0 %v1045
    %1092 = vmatprep.subr.bf16.mxu0 0
    %1093 = vmatpush1.bf16.msra.mxu0 %v1046
    %1094 = vmatprep.subr.bf16.mxu0 0
    %1095 = vmatpush1.bf16.msra.mxu0 %v1047
    %1096 = vmatprep.mubr.bf16.mxu0 %v928
    %1097 = vmatmul.mubr.bf16.gmra.mrb[0].mxu0 %v927
    %v1098 = vpop.f32.mrb[0].mxu0
    %v1099 = vadd.f32 %v966, %v1098
    %v1100 = vpop.f32.mrb[0].mxu0
    %v1101 = vpop.f32.mrb[0].mxu0
    %v1102 = vpop.f32.mrb[0].mxu0
    %1103 = vdwg.mxu0
    %1104 = vst [vmem:[#allocation2] sm:$0xff] %v1099
    // Predicated region
    $region34: #{tpu_custom_call.1} parent=1 // pred_check
      _
    $region35: #{tpu_custom_call.1} parent=1 // pred_check_branch
      %1106 = sbr.rel (0) target = $region37
    $region36: #{tpu_custom_call.1} parent=1 // pred_region
      %s1108 = ssub.s32 128, 128
      %1109 = vsyncadd [#allocation3], %s1108
      %s1111 = sshll.u32 [#allocation2], 4
      %s1112 = int_to_ptr.vmem [resolvable:$true] %s1111
      %1114 = dma.vmem_to_hbm [thread:$0]  %s1112, 128, %s8, [#allocation3]
    $region37: #{tpu_custom_call.1} parent=1 // pred_fallthru
      _
    // Predicated region
    $region38: #{tpu_custom_call.1} parent=1 // pred_check
      _
    $region39: #{tpu_custom_call.1} parent=1 // pred_check_branch
      %1116 = sbr.rel (0) target = $region41
    $region40: #{tpu_custom_call.1} parent=1 // pred_region
      %1117 = dma.done [#allocation3], 128
    $region41: #{tpu_custom_call.1} parent=1 // pred_fallthru
      _
    %1118 = vsyncpa [#allocation3], 1

</llo_original>
